<compile_context>
chip_gen: v6e
topology: v6e:2x2x1
jax: 0.10.0
libtpu: 0.0.40
codegen_flags: <defaults>
</compile_context>

<pallas_src>
import functools

import numpy as np

import jax
import jax.numpy as jnp
from jax.experimental import pallas as pl
from jax.experimental.pallas import tpu as pltpu


NEG_SLOPE = 0.05  # LeakyReLU(0.05)
LANES = 128


def _round_up(n, m):
    return ((n + m - 1) // m) * m


# ----------------------------------------------------------------------------
# One-time parameter preparation (NOT on the hot path): conv -> dense matrix,
# Linear+Linear -> fused matrix, biases -> one stacked buffer, lane padding.
# ----------------------------------------------------------------------------
def _conv1d_as_matrix(w, b, stride, l_in):
    """Conv1d(pad=0, dil=1): (Cin*Lin,) -> (Cout*Lout,) dense matrix."""
    w = np.asarray(w, np.float32)
    b = np.asarray(b, np.float32)
    c_out, c_in, k_sz = w.shape
    l_out = (l_in - k_sz) // stride + 1
    mat = np.zeros((c_in * l_in, c_out * l_out), np.float32)
    lo = np.arange(l_out)
    for oc in range(c_out):
        for ic in range(c_in):
            for k in range(k_sz):
                mat[ic * l_in + lo * stride + k, oc * l_out + lo] = w[oc, ic, k]
    bias = np.repeat(b, l_out)
    return mat, bias, l_out


def _convtranspose1d_as_matrix(w, b, stride, out_pad, l_in):
    """ConvTranspose1d(pad=0, dil=1): (Cin*Lin,) -> (Cout*Lout,) dense matrix."""
    w = np.asarray(w, np.float32)
    b = np.asarray(b, np.float32)
    c_in, c_out, k_sz = w.shape
    l_out = (l_in - 1) * stride + k_sz + out_pad
    mat = np.zeros((c_in * l_in, c_out * l_out), np.float32)
    j = np.arange(l_in)
    for ic in range(c_in):
        for oc in range(c_out):
            for k in range(k_sz):
                mat[ic * l_in + j, oc * l_out + j * stride + k] = w[ic, oc, k]
    bias = np.repeat(b, l_out)
    return mat, bias, l_out


def prepare_ae_params(params, input_length, encoder_output_dim,
                      weight_dtype=jnp.float32):
    """Convert PyTorch-layout AE params into a padded, lane-dense matmul chain.

    Call ONCE at init time (all transposes / reshapes / matrix building and the
    encoding@decoder Linear fusion are hoisted out of the per-call hot path).
    """
    chain = []  # list of (matrix (in,out), bias (out,), apply_leaky_relu)

    # Encoder: Conv1d + LeakyReLU after every layer.
    length = input_length
    for (w, b, stride) in params["encoder"]:
        mat, bias, length = _conv1d_as_matrix(w, b, stride, length)
        chain.append((mat, bias, True))

    # Encoding Linear and decoder Linear have no activation between them ->
    # fuse offline into one exact matrix (shorter MXU chain, fewer params).
    enc_w, enc_b = params["encoding"]
    dec_w, dec_b = params["decoder_linear"]
    enc_mat = np.asarray(enc_w, np.float32).T      # (flat_dim, enc_dim)
    dec_mat = np.asarray(dec_w, np.float32).T      # (enc_dim, flat_dim)
    fused_mat = enc_mat @ dec_mat                  # (flat_dim, flat_dim)
    fused_b = np.asarray(enc_b, np.float32) @ dec_mat + np.asarray(dec_b, np.float32)
    chain.append((fused_mat, fused_b, False))      # Unflatten is a no-op here.

    # Decoder ConvTranspose1d layers, LeakyReLU between (not after last).
    length = encoder_output_dim[1]
    out_channels = encoder_output_dim[0]
    n_dec = len(params["decoder_convt"])
    for i, (w, b, stride, out_pad) in enumerate(params["decoder_convt"]):
        mat, bias, length = _convtranspose1d_as_matrix(w, b, stride, out_pad, length)
        chain.append((mat, bias, i != n_dec - 1))
        out_channels = np.asarray(w).shape[1]

    # Lane-dense padding: every layer's output width padded to a multiple of
    # 128; the next layer's extra input rows are zero so the math is unchanged
    # (LeakyReLU(0) == 0).  Biases are packed into one stacked buffer.
    mats, acts = [], []
    prev_cols_p = chain[0][0].shape[0]            # raw flattened input width
    max_cols_p = max(_round_up(m.shape[1], LANES) for m, _, _ in chain)
    bias_stack = np.zeros((len(chain), max_cols_p), np.float32)
    true_out_width = None
    for li, (mat, bias, act) in enumerate(chain):
        rows, cols = mat.shape
        cols_p = _round_up(cols, LANES)
        mat_p = np.zeros((prev_cols_p, cols_p), np.float32)
        mat_p[:rows, :cols] = mat
        bias_stack[li, :cols] = bias
        mats.append(jnp.asarray(mat_p, dtype=weight_dtype))
        acts.append(bool(act))
        prev_cols_p = cols_p
        true_out_width = cols

    return {
        "mats": mats,
        "bias": jnp.asarray(bias_stack),          # (n_layers, max_cols_p) f32
        "acts": tuple(acts),
        "out_features": true_out_width,
        "out_shape": (int(out_channels), int(length)),
    }


# ----------------------------------------------------------------------------
# Fused kernel: chain of MXU matmuls + VPU bias / LeakyReLU on one batch tile.
# ----------------------------------------------------------------------------
def _ae_chain_kernel(*refs, acts, n_layers):
    x_ref = refs[0]
    w_refs = refs[1:1 + n_layers]
    b_ref = refs[1 + n_layers]
    o_ref = refs[2 + n_layers]

    h = x_ref[...]
    for i in range(n_layers):
        w = w_refs[i][...]
        cols_p = w.shape[1]
        h = jnp.dot(h.astype(w.dtype), w, preferred_element_type=jnp.float32)
        h = h + b_ref[i:i + 1, :cols_p]
        if acts[i]:
            h = jnp.maximum(h, NEG_SLOPE * h)     # LeakyReLU(0.05), slope<1
    o_ref[...] = h.astype(o_ref.dtype)


def ae_forward(x, prepared, *, tile_b=1024):
    """x: (B, C_in, L_in) float32 -> (B, C_out, L_out)."""
    mats, bias, acts = prepared["mats"], prepared["bias"], prepared["acts"]
    out_features = prepared["out_features"]
    out_c, out_l = prepared["out_shape"]
    n_layers = len(mats)

    batch = x.shape[0]
    f0 = x.shape[1] * x.shape[2]
    x2 = x.reshape(batch, f0)

    # Tile selection:
    #  * large default (amortize the ~0.35 us fixed per-grid-step overhead),
    #  * always a multiple of 8 sublanes,
    #  * >=2 grid steps whenever the batch allows, so the "parallel" axis can
    #    be sharded across both v7x TensorCores (free on 1-TC v5e/v6e).
    tile = _round_up(max(8, min(int(tile_b), batch)), 8)
    if batch > 8 and _round_up(batch, tile) // tile < 2:
        tile = _round_up(pl.cdiv(batch, 2), 8)
    padded_b = _round_up(batch, tile)
    assert tile % 8 == 0 and padded_b % tile == 0
    if padded_b != batch:
        x2 = jnp.pad(x2, ((0, padded_b - batch), (0, 0)))

    out_p = mats[-1].shape[1]
    grid = (padded_b // tile,)

    # Constant index maps -> weights/bias are resident in VMEM across steps.
    w_specs = [pl.BlockSpec(w.shape, lambda i: (0, 0)) for w in mats]
    b_spec = pl.BlockSpec(bias.shape, lambda i: (0, 0))

    flops = 2 * padded_b * sum(int(w.shape[0]) * int(w.shape[1]) for w in mats)
    bytes_accessed = (int(x2.size) * x2.dtype.itemsize
                      + sum(int(w.size) * w.dtype.itemsize for w in mats)
                      + int(bias.size) * 4
                      + padded_b * int(out_p) * 4)

    out = pl.pallas_call(
        functools.partial(_ae_chain_kernel, acts=acts, n_layers=n_layers),
        out_shape=jax.ShapeDtypeStruct((padded_b, out_p), jnp.float32),
        grid=grid,
        in_specs=[pl.BlockSpec((tile, f0), lambda i: (i, 0))] + w_specs + [b_spec],
        out_specs=pl.BlockSpec((tile, out_p), lambda i: (i, 0)),
        compiler_params=pltpu.CompilerParams(
            dimension_semantics=("parallel",)),
        cost_estimate=pl.CostEstimate(flops=flops, transcendentals=0,
                                      bytes_accessed=bytes_accessed),
    )(x2, *mats, bias)

    return out[:batch, :out_features].reshape(batch, out_c, out_l)


# ----------------------------------------------------------------------------
# Pure-JAX reference (mirrors the PyTorch module op-for-op).
# ----------------------------------------------------------------------------
def _leaky(x):
    return jnp.where(x > 0, x, NEG_SLOPE * x)


def _conv1d_ref(x, w, b, stride):
    bsz, c_in, l_in = x.shape
    c_out, _, k_sz = w.shape
    l_out = (l_in - k_sz) // stride + 1
    out = jnp.zeros((bsz, c_out, l_out), jnp.float32)
    for k in range(k_sz):
        xk = jax.lax.slice(x, (0, 0, k),
                           (bsz, c_in, k + stride * (l_out - 1) + 1),
                           (1, 1, stride))
        out = out + jnp.einsum('oi,bil->bol', w[:, :, k], xk)
    return out + b[None, :, None]


def _convtranspose1d_ref(x, w, b, stride, out_pad):
    bsz, c_in, l_in = x.shape
    _, c_out, k_sz = w.shape
    l_out = (l_in - 1) * stride + k_sz + out_pad
    out = jnp.zeros((bsz, c_out, l_out), jnp.float32)
    for k in range(k_sz):
        contrib = jnp.einsum('io,bij->boj', w[:, :, k], x)
        out = out.at[:, :, k:k + stride * (l_in - 1) + 1:stride].add(contrib)
    return out + b[None, :, None]


def reference_forward(x, params, encoder_output_dim):
    h = x
    for (w, b, stride) in params["encoder"]:
        h = _leaky(_conv1d_ref(h, w, b, stride))
    bsz = h.shape[0]
    h = h.reshape(bsz, -1)
    w, b = params["encoding"]
    h = h @ w.T + b
    w, b = params["decoder_linear"]
    h = h @ w.T + b
    h = h.reshape(bsz, *encoder_output_dim)
    n_dec = len(params["decoder_convt"])
    for i, (w, b, stride, out_pad) in enumerate(params["decoder_convt"]):
        h = _convtranspose1d_ref(h, w, b, stride, out_pad)
        if i != n_dec - 1:
            h = _leaky(h)
    return h


# ----------------------------------------------------------------------------
# Demo / self-test
# ----------------------------------------------------------------------------
def _rand(key, shape, scale=0.1):
    return scale * jax.random.normal(key, shape, dtype=jnp.float32)


if __name__ == "__main__":
    # AE config (use_batch_norm=False):
    #   ConvEncoder(in_channels=1, [(8,3,2), (16,3,2)])   -> (16, 15)
    #   encoding = Linear(240, 8)
    #   ConvDecoder(in_features=8, (16,15), [(8,3,2,0), (1,3,2,1)]) -> (1, 64)
    in_channels = 1
    input_length = 64
    conv_encoder_layers = [(8, 3, 2), (16, 3, 2)]          # (out_ch, kernel, stride)
    encoder_output_dim = (16, 15)
    encoding_dim = 8
    conv_decoder_layers = [(8, 3, 2, 0), (1, 3, 2, 1)]     # (out_ch, k, stride, out_pad)
    batch = 16

    key = jax.random.PRNGKey(0)
    keys = jax.random.split(key, 16)
    ki = iter(range(16))

    params = {"encoder": [], "decoder_convt": []}
    c_in = in_channels
    for (c_out, k_sz, stride) in conv_encoder_layers:
        w = _rand(keys[next(ki)], (c_out, c_in, k_sz))
        b = _rand(keys[next(ki)], (c_out,))
        params["encoder"].append((w, b, stride))
        c_in = c_out

    flat_dim = encoder_output_dim[0] * encoder_output_dim[1]
    params["encoding"] = (_rand(keys[next(ki)], (encoding_dim, flat_dim)),
                          _rand(keys[next(ki)], (encoding_dim,)))
    params["decoder_linear"] = (_rand(keys[next(ki)], (flat_dim, encoding_dim)),
                                _rand(keys[next(ki)], (flat_dim,)))

    c_in = encoder_output_dim[0]
    for (c_out, k_sz, stride, out_pad) in conv_decoder_layers:
        w = _rand(keys[next(ki)], (c_in, c_out, k_sz))
        b = _rand(keys[next(ki)], (c_out,))
        params["decoder_convt"].append((w, b, stride, out_pad))
        c_in = c_out

    x = jax.random.normal(keys[next(ki)], (batch, in_channels, input_length),
                          dtype=jnp.float32)

    ref = reference_forward(x, params, encoder_output_dim)

    # Exact-semantics f32 path (also exercises the >=2-step "parallel" grid,
    # since batch=16 splits into two tiles of 8).
    prepared_f32 = prepare_ae_params(params, input_length, encoder_output_dim,
                                     weight_dtype=jnp.float32)
    out = jax.block_until_ready(ae_forward(x, prepared_f32))
    assert out.shape == (batch, 1, input_length), out.shape
    err = jnp.max(jnp.abs(out - ref))
    assert jnp.allclose(out, ref, atol=1e-4, rtol=1e-4), f"f32 max abs err {err}"

    # bf16-weight path (2-3x MXU throughput, half the weight DMA); f32
    # accumulation, validated at a bf16-appropriate tolerance.
    prepared_bf16 = prepare_ae_params(params, input_length, encoder_output_dim,
                                      weight_dtype=jnp.bfloat16)
    out_bf16 = jax.block_until_ready(ae_forward(x, prepared_bf16))
    err_bf16 = jnp.max(jnp.abs(out_bf16 - ref))
    assert jnp.allclose(out_bf16, ref, atol=3e-2, rtol=3e-2), \
        f"bf16 max abs err {err_bf16}"

    print("KERNEL_OK")
</pallas_src>

<mosaic_0001>
module attributes {stable_mosaic.version = 11 : i64} {
  func.func @_ae_chain_kernel(%arg0: i32, %arg1: memref<8x64xf32, #tpu.memory_space<vmem>>, %arg2: memref<64x256xf32, #tpu.memory_space<vmem>>, %arg3: memref<256x256xf32, #tpu.memory_space<vmem>>, %arg4: memref<256x256xf32, #tpu.memory_space<vmem>>, %arg5: memref<256x256xf32, #tpu.memory_space<vmem>>, %arg6: memref<256x128xf32, #tpu.memory_space<vmem>>, %arg7: memref<5x256xf32, #tpu.memory_space<vmem>>, %arg8: memref<8x128xf32, #tpu.memory_space<vmem>>) attributes {dimension_semantics = [#tpu.dimension_semantics<parallel>], iteration_bounds = array<i64: 2>, scalar_prefetch = 0 : i64, scratch_operands = 0 : i64, tpu.core_type = #tpu.core_type<tc>, window_params = [{transform_indices = @transform_0, window_bounds = array<i64: 8, 64>}, {pipeline_mode = #tpu.pipeline_mode<synchronous>, transform_indices = @transform_1, window_bounds = array<i64: 64, 256>}, {pipeline_mode = #tpu.pipeline_mode<synchronous>, transform_indices = @transform_2, window_bounds = array<i64: 256, 256>}, {pipeline_mode = #tpu.pipeline_mode<synchronous>, transform_indices = @transform_3, window_bounds = array<i64: 256, 256>}, {pipeline_mode = #tpu.pipeline_mode<synchronous>, transform_indices = @transform_4, window_bounds = array<i64: 256, 256>}, {pipeline_mode = #tpu.pipeline_mode<synchronous>, transform_indices = @transform_5, window_bounds = array<i64: 256, 128>}, {pipeline_mode = #tpu.pipeline_mode<synchronous>, transform_indices = @transform_6, window_bounds = array<i64: 5, 256>}, {transform_indices = @transform_7, window_bounds = array<i64: 8, 128>}]} {
    %c0 = arith.constant 0 : index
    %c0_0 = arith.constant 0 : index
    %0 = vector.load %arg1[%c0, %c0_0] : memref<8x64xf32, #tpu.memory_space<vmem>>, vector<8x64xf32>
    %c0_1 = arith.constant 0 : index
    %c0_2 = arith.constant 0 : index
    %1 = vector.load %arg2[%c0_1, %c0_2] : memref<64x256xf32, #tpu.memory_space<vmem>>, vector<64x256xf32>
    %cst = arith.constant dense<0.000000e+00> : vector<8x256xf32>
    %2 = tpu.matmul %0, %1, %cst {dimension_numbers = #tpu.dot_dimension_numbers<[1], [0], [0], [1], [0, 0, 1, 1], [], []>} : vector<8x64xf32>, vector<64x256xf32>, vector<8x256xf32> -> vector<8x256xf32>
    %c0_3 = arith.constant 0 : index
    %c0_4 = arith.constant 0 : index
    %3 = vector.load %arg7[%c0_3, %c0_4] : memref<5x256xf32, #tpu.memory_space<vmem>>, vector<1x256xf32>
    %4 = vector.broadcast %3 : vector<1x256xf32> to vector<8x256xf32>
    %5 = arith.addf %2, %4 : vector<8x256xf32>
    %cst_5 = arith.constant 5.000000e-02 : f32
    %6 = vector.broadcast %cst_5 : f32 to vector<8x256xf32>
    %7 = arith.mulf %6, %5 : vector<8x256xf32>
    %8 = arith.maximumf %5, %7 : vector<8x256xf32>
    %c0_6 = arith.constant 0 : index
    %c0_7 = arith.constant 0 : index
    %9 = vector.load %arg3[%c0_6, %c0_7] : memref<256x256xf32, #tpu.memory_space<vmem>>, vector<256x256xf32>
    %cst_8 = arith.constant dense<0.000000e+00> : vector<8x256xf32>
    %10 = tpu.matmul %8, %9, %cst_8 {dimension_numbers = #tpu.dot_dimension_numbers<[1], [0], [0], [1], [0, 0, 1, 1], [], []>} : vector<8x256xf32>, vector<256x256xf32>, vector<8x256xf32> -> vector<8x256xf32>
    %c1 = arith.constant 1 : index
    %c0_9 = arith.constant 0 : index
    %11 = vector.load %arg7[%c1, %c0_9] : memref<5x256xf32, #tpu.memory_space<vmem>>, vector<1x256xf32>
    %12 = vector.broadcast %11 : vector<1x256xf32> to vector<8x256xf32>
    %13 = arith.addf %10, %12 : vector<8x256xf32>
    %cst_10 = arith.constant 5.000000e-02 : f32
    %14 = vector.broadcast %cst_10 : f32 to vector<8x256xf32>
    %15 = arith.mulf %14, %13 : vector<8x256xf32>
    %16 = arith.maximumf %13, %15 : vector<8x256xf32>
    %c0_11 = arith.constant 0 : index
    %c0_12 = arith.constant 0 : index
    %17 = vector.load %arg4[%c0_11, %c0_12] : memref<256x256xf32, #tpu.memory_space<vmem>>, vector<256x256xf32>
    %cst_13 = arith.constant dense<0.000000e+00> : vector<8x256xf32>
    %18 = tpu.matmul %16, %17, %cst_13 {dimension_numbers = #tpu.dot_dimension_numbers<[1], [0], [0], [1], [0, 0, 1, 1], [], []>} : vector<8x256xf32>, vector<256x256xf32>, vector<8x256xf32> -> vector<8x256xf32>
    %c2 = arith.constant 2 : index
    %c0_14 = arith.constant 0 : index
    %19 = vector.load %arg7[%c2, %c0_14] : memref<5x256xf32, #tpu.memory_space<vmem>>, vector<1x256xf32>
    %20 = vector.broadcast %19 : vector<1x256xf32> to vector<8x256xf32>
    %21 = arith.addf %18, %20 : vector<8x256xf32>
    %c0_15 = arith.constant 0 : index
    %c0_16 = arith.constant 0 : index
    %22 = vector.load %arg5[%c0_15, %c0_16] : memref<256x256xf32, #tpu.memory_space<vmem>>, vector<256x256xf32>
    %cst_17 = arith.constant dense<0.000000e+00> : vector<8x256xf32>
    %23 = tpu.matmul %21, %22, %cst_17 {dimension_numbers = #tpu.dot_dimension_numbers<[1], [0], [0], [1], [0, 0, 1, 1], [], []>} : vector<8x256xf32>, vector<256x256xf32>, vector<8x256xf32> -> vector<8x256xf32>
    %c3 = arith.constant 3 : index
    %c0_18 = arith.constant 0 : index
    %24 = vector.load %arg7[%c3, %c0_18] : memref<5x256xf32, #tpu.memory_space<vmem>>, vector<1x256xf32>
    %25 = vector.broadcast %24 : vector<1x256xf32> to vector<8x256xf32>
    %26 = arith.addf %23, %25 : vector<8x256xf32>
    %cst_19 = arith.constant 5.000000e-02 : f32
    %27 = vector.broadcast %cst_19 : f32 to vector<8x256xf32>
    %28 = arith.mulf %27, %26 : vector<8x256xf32>
    %29 = arith.maximumf %26, %28 : vector<8x256xf32>
    %c0_20 = arith.constant 0 : index
    %c0_21 = arith.constant 0 : index
    %30 = vector.load %arg6[%c0_20, %c0_21] : memref<256x128xf32, #tpu.memory_space<vmem>>, vector<256x128xf32>
    %cst_22 = arith.constant dense<0.000000e+00> : vector<8x128xf32>
    %31 = tpu.matmul %29, %30, %cst_22 {dimension_numbers = #tpu.dot_dimension_numbers<[1], [0], [0], [1], [0, 0, 1, 1], [], []>} : vector<8x256xf32>, vector<256x128xf32>, vector<8x128xf32> -> vector<8x128xf32>
    %c4 = arith.constant 4 : index
    %c0_23 = arith.constant 0 : index
    %32 = vector.load %arg7[%c4, %c0_23] : memref<5x256xf32, #tpu.memory_space<vmem>>, vector<1x128xf32>
    %33 = vector.broadcast %32 : vector<1x128xf32> to vector<8x128xf32>
    %34 = arith.addf %31, %33 : vector<8x128xf32>
    %c0_24 = arith.constant 0 : index
    %c0_25 = arith.constant 0 : index
    %35 = vector.load %arg8[%c0_24, %c0_25] : memref<8x128xf32, #tpu.memory_space<vmem>>, vector<8x128xf32>
    tpu.vector_store %arg8[%c0_24, %c0_25], %34 {strides = array<i32>} : memref<8x128xf32, #tpu.memory_space<vmem>>, vector<8x128xf32>,
    return
  }
  func.func @transform_0(%arg0: i32) -> (i32, i32) {
    %c0_i32 = arith.constant 0 : i32
    %c0_i32_0 = arith.constant 0 : i32
    return %arg0, %c0_i32 : i32, i32
  }
  func.func @transform_1(%arg0: i32) -> (i32, i32) {
    %c0_i32 = arith.constant 0 : i32
    %c0_i32_0 = arith.constant 0 : i32
    %c0_i32_1 = arith.constant 0 : i32
    return %c0_i32, %c0_i32_0 : i32, i32
  }
  func.func @transform_2(%arg0: i32) -> (i32, i32) {
    %c0_i32 = arith.constant 0 : i32
    %c0_i32_0 = arith.constant 0 : i32
    %c0_i32_1 = arith.constant 0 : i32
    return %c0_i32, %c0_i32_0 : i32, i32
  }
  func.func @transform_3(%arg0: i32) -> (i32, i32) {
    %c0_i32 = arith.constant 0 : i32
    %c0_i32_0 = arith.constant 0 : i32
    %c0_i32_1 = arith.constant 0 : i32
    return %c0_i32, %c0_i32_0 : i32, i32
  }
  func.func @transform_4(%arg0: i32) -> (i32, i32) {
    %c0_i32 = arith.constant 0 : i32
    %c0_i32_0 = arith.constant 0 : i32
    %c0_i32_1 = arith.constant 0 : i32
    return %c0_i32, %c0_i32_0 : i32, i32
  }
  func.func @transform_5(%arg0: i32) -> (i32, i32) {
    %c0_i32 = arith.constant 0 : i32
    %c0_i32_0 = arith.constant 0 : i32
    %c0_i32_1 = arith.constant 0 : i32
    return %c0_i32, %c0_i32_0 : i32, i32
  }
  func.func @transform_6(%arg0: i32) -> (i32, i32) {
    %c0_i32 = arith.constant 0 : i32
    %c0_i32_0 = arith.constant 0 : i32
    %c0_i32_1 = arith.constant 0 : i32
    return %c0_i32, %c0_i32_0 : i32, i32
  }
  func.func @transform_7(%arg0: i32) -> (i32, i32) {
    %c0_i32 = arith.constant 0 : i32
    %c0_i32_0 = arith.constant 0 : i32
    return %arg0, %c0_i32 : i32, i32
  }
}

</mosaic_0001>

<llo_original>
// kernel: tpu_custom_call.1
$region0: #{tpu_custom_call.1}
  #allocation0 [shape = 'u32[]', space=smem, size = 0x4, offset = 0x4, fixed_abs, tag = 'smem constant byte address 0x4 - core index']
  #allocation1 [shape = 'u32[144,128]{1,0:T(1,128)}', space=vmem, size = 0x12000, scoped, tag = 'internal scratch']
  %s0 = inlined_call_operand.hbm [shape: f32[16,64], index: 0, kind: input, shape index: {}]
  %s1 = inlined_call_operand.hbm [shape: f32[64,256], index: 1, kind: input, shape index: {}]
  %s2 = inlined_call_operand.hbm [shape: f32[256,256], index: 2, kind: input, shape index: {}]
  %s3 = inlined_call_operand.hbm [shape: f32[256,256], index: 3, kind: input, shape index: {}]
  %s4 = inlined_call_operand.hbm [shape: f32[256,256], index: 4, kind: input, shape index: {}]
  %s5 = inlined_call_operand.hbm [shape: f32[256,128], index: 5, kind: input, shape index: {}]
  %s6 = inlined_call_operand.hbm [shape: f32[5,256], index: 6, kind: input, shape index: {}]
  %s7 = inlined_call_operand.hbm [shape: f32[16,128], index: 7, kind: output, shape index: {}]
  %s8 = sld [smem:[#allocation0]]
  $region89: #{tpu_custom_call.1} parent=0
    _
  %s10 = ssub.s32 1, %s8
  %s11 = scalar_select 0, %s10, %s8
  $region1: #{tpu_custom_call.1} parent=0
    #allocation2 [shape = 'u8[8192]{0}', space=vmem, size = 0x2000, scoped, tag = 'input window, operand 0']
    #allocation3 [shape = 's32[2]{0}', space=sflag, size = 0x8, scoped, tag = 'scoped memory for tpu_custom_call.1']
    #allocation4 [shape = 's32[2]{0}', space=sflag, size = 0x8, scoped, tag = 'scoped memory for tpu_custom_call.1']
    #allocation5 [shape = 'u8[65536]{0}', space=vmem, size = 0x10000, scoped, tag = 'input window, operand 1, single buffered']
    #allocation6 [shape = 's32[1]{0}', space=sflag, size = 0x4, scoped, tag = 'scoped memory for tpu_custom_call.1']
    #allocation7 [shape = 'u8[262144]{0}', space=vmem, size = 0x40000, scoped, tag = 'input window, operand 2, single buffered']
    #allocation8 [shape = 'u8[262144]{0}', space=vmem, size = 0x40000, scoped, tag = 'input window, operand 3, single buffered']
    #allocation9 [shape = 's32[1]{0}', space=sflag, size = 0x4, scoped, tag = 'scoped memory for tpu_custom_call.1']
    #allocation10 [shape = 'u8[262144]{0}', space=vmem, size = 0x40000, scoped, tag = 'input window, operand 4, single buffered']
    #allocation11 [shape = 'u8[131072]{0}', space=vmem, size = 0x20000, scoped, tag = 'input window, operand 5, single buffered']
    #allocation12 [shape = 's32[1]{0}', space=sflag, size = 0x4, scoped, tag = 'scoped memory for tpu_custom_call.1']
    #allocation13 [shape = 'u8[8192]{0}', space=vmem, size = 0x2000, scoped, tag = 'input window, operand 6, single buffered']
    #allocation14 [shape = 'u8[8192]{0}', space=vmem, size = 0x2000, scoped, tag = 'output window, operand 0']
    %12 = vsyncpa [#allocation3], 0
    %s13 = scalar_lea.sflag [#allocation3], 1
    %14 = vsyncpa %s13, 0
    %15 = vsyncpa [#allocation6], 0
    %16 = vsyncpa [#allocation9], 0
    %17 = vsyncpa [#allocation12], 0
    %18 = vsyncpa [#allocation4], 0
    %s19 = scalar_lea.sflag [#allocation4], 1
    %20 = vsyncpa %s19, 0
    loop: start=0, step=1, limit=4
    $region2: #{tpu_custom_call.1} parent=1 // loop_pre_header
      _
    $region3: #{tpu_custom_call.1} parent=1 // loop_header
      %s22 = sphi 0, %s26
      %p23 = scmp.ge.s32.totalorder %s22, 4
      %s32 = sphi 0, %s34
      %s35 = sphi 0, %s32
      %s36 = sphi 0, %s35
      %s52 = sphi 0, %s36
      %s56 = sphi 0, %s56
      %s58 = sphi 0, %s56
      %s59 = sphi 0, %s58
      %s73 = sphi 0, %s59
      %s77 = sphi 0, %s77
      %s79 = sphi 0, %s77
      %s80 = sphi 0, %s79
      %s94 = sphi 0, %s80
      %s98 = sphi 0, %s98
      %s100 = sphi 0, %s98
      %s101 = sphi 0, %s100
      %s115 = sphi 0, %s101
      %s119 = sphi 0, %s119
      %s121 = sphi 0, %s119
      %s122 = sphi 0, %s121
      %s136 = sphi 0, %s122
      %s140 = sphi 0, %s140
      %s142 = sphi 0, %s140
      %s143 = sphi 0, %s142
      %s157 = sphi 0, %s143
      %s161 = sphi 0, %s161
      %s163 = sphi 0, %s161
      %s164 = sphi 0, %s163
      %s178 = sphi 0, %s164
      %s184 = sphi 0, %s186
      %s187 = sphi 0, %s184
      %s188 = sphi 0, %s187
      %s204 = sphi 0, %s188
    $region4: #{tpu_custom_call.1} parent=1 // loop_header_branch
      %25 = sbr.rel (%p23) target = $region8
    $region5: #{tpu_custom_call.1} parent=1 // loop_body
      %s27 = ssub.s32 %s22, 1
      %s28 = ssub.s32 %s22, 2
      %s29 = sadd.s32 %s22, 1
      %s30 = ssub.s32 %s22, %s29
      %p31 = scmp.eq.s32.totalorder %s30, 0
      %s33 = sadd.s32 %s32, 1
      %s34 = scalar_select %p31, %s32, %s33
      %p37 = pneg %p31
      %p38 = scmp.eq.s32.totalorder %s22, 1
      %p39 = por %p37, %p38
      %p40 = scmp.ne.s32.totalorder %s32, %s35
      %p41 = scmp.eq.s32.totalorder %s22, 0
      %p42 = por %p40, %p41
      %p43 = scmp.ne.s32.totalorder %s32, %s35
      %p44 = scmp.eq.s32.totalorder %s27, 1
      %p45 = por %p43, %p44
      %p46 = scmp.ne.s32.totalorder %s35, %s36
      %p47 = scmp.eq.s32.totalorder %s27, 0
      %p48 = por %p46, %p47
      %p49 = scmp.ne.s32.totalorder %s35, %s36
      %p50 = scmp.eq.s32.totalorder %s28, 1
      %p51 = por %p49, %p50
      %p53 = scmp.ne.s32.totalorder %s36, %s52
      %p54 = scmp.eq.s32.totalorder %s28, 0
      %p55 = por %p53, %p54
      %s57 = sadd.s32 %s56, 1
      %p60 = scmp.eq.s32.totalorder %s22, 1
      %p61 = scmp.ne.s32.totalorder %s56, %s58
      %p62 = scmp.eq.s32.totalorder %s22, 0
      %p63 = por %p61, %p62
      %p64 = scmp.ne.s32.totalorder %s56, %s58
      %p65 = scmp.eq.s32.totalorder %s27, 1
      %p66 = por %p64, %p65
      %p67 = scmp.ne.s32.totalorder %s58, %s59
      %p68 = scmp.eq.s32.totalorder %s27, 0
      %p69 = por %p67, %p68
      %p70 = scmp.ne.s32.totalorder %s58, %s59
      %p71 = scmp.eq.s32.totalorder %s28, 1
      %p72 = por %p70, %p71
      %p74 = scmp.ne.s32.totalorder %s59, %s73
      %p75 = scmp.eq.s32.totalorder %s28, 0
      %p76 = por %p74, %p75
      %s78 = sadd.s32 %s77, 1
      %p81 = scmp.eq.s32.totalorder %s22, 1
      %p82 = scmp.ne.s32.totalorder %s77, %s79
      %p83 = scmp.eq.s32.totalorder %s22, 0
      %p84 = por %p82, %p83
      %p85 = scmp.ne.s32.totalorder %s77, %s79
      %p86 = scmp.eq.s32.totalorder %s27, 1
      %p87 = por %p85, %p86
      %p88 = scmp.ne.s32.totalorder %s79, %s80
      %p89 = scmp.eq.s32.totalorder %s27, 0
      %p90 = por %p88, %p89
      %p91 = scmp.ne.s32.totalorder %s79, %s80
      %p92 = scmp.eq.s32.totalorder %s28, 1
      %p93 = por %p91, %p92
      %p95 = scmp.ne.s32.totalorder %s80, %s94
      %p96 = scmp.eq.s32.totalorder %s28, 0
      %p97 = por %p95, %p96
      %s99 = sadd.s32 %s98, 1
      %p102 = scmp.eq.s32.totalorder %s22, 1
      %p103 = scmp.ne.s32.totalorder %s98, %s100
      %p104 = scmp.eq.s32.totalorder %s22, 0
      %p105 = por %p103, %p104
      %p106 = scmp.ne.s32.totalorder %s98, %s100
      %p107 = scmp.eq.s32.totalorder %s27, 1
      %p108 = por %p106, %p107
      %p109 = scmp.ne.s32.totalorder %s100, %s101
      %p110 = scmp.eq.s32.totalorder %s27, 0
      %p111 = por %p109, %p110
      %p112 = scmp.ne.s32.totalorder %s100, %s101
      %p113 = scmp.eq.s32.totalorder %s28, 1
      %p114 = por %p112, %p113
      %p116 = scmp.ne.s32.totalorder %s101, %s115
      %p117 = scmp.eq.s32.totalorder %s28, 0
      %p118 = por %p116, %p117
      %s120 = sadd.s32 %s119, 1
      %p123 = scmp.eq.s32.totalorder %s22, 1
      %p124 = scmp.ne.s32.totalorder %s119, %s121
      %p125 = scmp.eq.s32.totalorder %s22, 0
      %p126 = por %p124, %p125
      %p127 = scmp.ne.s32.totalorder %s119, %s121
      %p128 = scmp.eq.s32.totalorder %s27, 1
      %p129 = por %p127, %p128
      %p130 = scmp.ne.s32.totalorder %s121, %s122
      %p131 = scmp.eq.s32.totalorder %s27, 0
      %p132 = por %p130, %p131
      %p133 = scmp.ne.s32.totalorder %s121, %s122
      %p134 = scmp.eq.s32.totalorder %s28, 1
      %p135 = por %p133, %p134
      %p137 = scmp.ne.s32.totalorder %s122, %s136
      %p138 = scmp.eq.s32.totalorder %s28, 0
      %p139 = por %p137, %p138
      %s141 = sadd.s32 %s140, 1
      %p144 = scmp.eq.s32.totalorder %s22, 1
      %p145 = scmp.ne.s32.totalorder %s140, %s142
      %p146 = scmp.eq.s32.totalorder %s22, 0
      %p147 = por %p145, %p146
      %p148 = scmp.ne.s32.totalorder %s140, %s142
      %p149 = scmp.eq.s32.totalorder %s27, 1
      %p150 = por %p148, %p149
      %p151 = scmp.ne.s32.totalorder %s142, %s143
      %p152 = scmp.eq.s32.totalorder %s27, 0
      %p153 = por %p151, %p152
      %p154 = scmp.ne.s32.totalorder %s142, %s143
      %p155 = scmp.eq.s32.totalorder %s28, 1
      %p156 = por %p154, %p155
      %p158 = scmp.ne.s32.totalorder %s143, %s157
      %p159 = scmp.eq.s32.totalorder %s28, 0
      %p160 = por %p158, %p159
      %s162 = sadd.s32 %s161, 1
      %p165 = scmp.eq.s32.totalorder %s22, 1
      %p166 = scmp.ne.s32.totalorder %s161, %s163
      %p167 = scmp.eq.s32.totalorder %s22, 0
      %p168 = por %p166, %p167
      %p169 = scmp.ne.s32.totalorder %s161, %s163
      %p170 = scmp.eq.s32.totalorder %s27, 1
      %p171 = por %p169, %p170
      %p172 = scmp.ne.s32.totalorder %s163, %s164
      %p173 = scmp.eq.s32.totalorder %s27, 0
      %p174 = por %p172, %p173
      %p175 = scmp.ne.s32.totalorder %s163, %s164
      %p176 = scmp.eq.s32.totalorder %s28, 1
      %p177 = por %p175, %p176
      %p179 = scmp.ne.s32.totalorder %s164, %s178
      %p180 = scmp.eq.s32.totalorder %s28, 0
      %p181 = por %p179, %p180
      %s182 = ssub.s32 %s22, %s29
      %p183 = scmp.eq.s32.totalorder %s182, 0
      %s185 = sadd.s32 %s184, 1
      %s186 = scalar_select %p183, %s184, %s185
      %p189 = pneg %p183
      %p190 = scmp.eq.s32.totalorder %s22, 1
      %p191 = por %p189, %p190
      %p192 = scmp.ne.s32.totalorder %s184, %s187
      %p193 = scmp.eq.s32.totalorder %s22, 0
      %p194 = por %p192, %p193
      %p195 = scmp.ne.s32.totalorder %s184, %s187
      %p196 = scmp.eq.s32.totalorder %s27, 1
      %p197 = por %p195, %p196
      %p198 = scmp.ne.s32.totalorder %s187, %s188
      %p199 = scmp.eq.s32.totalorder %s27, 0
      %p200 = por %p198, %p199
      %p201 = scmp.ne.s32.totalorder %s187, %s188
      %p202 = scmp.eq.s32.totalorder %s28, 1
      %p203 = por %p201, %p202
      %p205 = scmp.ne.s32.totalorder %s188, %s204
      %p206 = scmp.eq.s32.totalorder %s28, 0
      %p207 = por %p205, %p206
      %p208 = scmp.le.s32.totalorder 1, %s22
      %p209 = scmp.lt.s32.totalorder %s22, 3
      %p210 = pnand %p208, %p209
      %p211 = pneg %p210
      // Predicated region
      $region9: #{tpu_custom_call.1} parent=5 // pred_check
        _
      $region10: #{tpu_custom_call.1} parent=5 // pred_check_branch
        %213 = sbr.rel (%p210) target = $region12
      $region11: #{tpu_custom_call.1} parent=5 // pred_region
        %s214 = ssub.s32 %s22, 1
        // Predicated region
        $region13: #{tpu_custom_call.1} parent=11 // pred_check
          %p215 = pneg %p69
        $region14: #{tpu_custom_call.1} parent=11 // pred_check_branch
          %217 = sbr.rel (%p215) target = $region16
        $region15: #{tpu_custom_call.1} parent=11 // pred_region
          %s219 = ssub.s32 2048, 2048
          %220 = vsyncadd [#allocation6], %s219
          %s221 = sshll.u32 [#allocation5], 4
          %s222 = int_to_ptr.vmem [resolvable:$true] %s221
          %227 = dma.hbm_to_vmem [thread:$0]  %s1, 2048, %s222, [#allocation6], 256, 256, 16
        $region16: #{tpu_custom_call.1} parent=11 // pred_fallthru
          _
        // Predicated region
        $region17: #{tpu_custom_call.1} parent=11 // pred_check
          %p228 = pneg %p90
        $region18: #{tpu_custom_call.1} parent=11 // pred_check_branch
          %230 = sbr.rel (%p228) target = $region20
        $region19: #{tpu_custom_call.1} parent=11 // pred_region
          %s232 = ssub.s32 8192, 8192
          %233 = vsyncadd [#allocation6], %s232
          %s234 = sshll.u32 [#allocation7], 4
          %s235 = int_to_ptr.vmem [resolvable:$true] %s234
          %240 = dma.hbm_to_vmem [thread:$0]  %s2, 8192, %s235, [#allocation6], 256, 256, 16
        $region20: #{tpu_custom_call.1} parent=11 // pred_fallthru
          _
        // Predicated region
        $region21: #{tpu_custom_call.1} parent=11 // pred_check
          %p241 = pneg %p111
        $region22: #{tpu_custom_call.1} parent=11 // pred_check_branch
          %243 = sbr.rel (%p241) target = $region24
        $region23: #{tpu_custom_call.1} parent=11 // pred_region
          %s245 = ssub.s32 8192, 8192
          %246 = vsyncadd [#allocation9], %s245
          %s247 = sshll.u32 [#allocation8], 4
          %s248 = int_to_ptr.vmem [resolvable:$true] %s247
          %253 = dma.hbm_to_vmem [thread:$0]  %s3, 8192, %s248, [#allocation9], 256, 256, 16
        $region24: #{tpu_custom_call.1} parent=11 // pred_fallthru
          _
        // Predicated region
        $region25: #{tpu_custom_call.1} parent=11 // pred_check
          %p254 = pneg %p132
        $region26: #{tpu_custom_call.1} parent=11 // pred_check_branch
          %256 = sbr.rel (%p254) target = $region28
        $region27: #{tpu_custom_call.1} parent=11 // pred_region
          %s258 = ssub.s32 8192, 8192
          %259 = vsyncadd [#allocation9], %s258
          %s260 = sshll.u32 [#allocation10], 4
          %s261 = int_to_ptr.vmem [resolvable:$true] %s260
          %266 = dma.hbm_to_vmem [thread:$0]  %s4, 8192, %s261, [#allocation9], 256, 256, 16
        $region28: #{tpu_custom_call.1} parent=11 // pred_fallthru
          _
        // Predicated region
        $region29: #{tpu_custom_call.1} parent=11 // pred_check
          %p267 = pneg %p153
        $region30: #{tpu_custom_call.1} parent=11 // pred_check_branch
          %269 = sbr.rel (%p267) target = $region32
        $region31: #{tpu_custom_call.1} parent=11 // pred_region
          %s271 = ssub.s32 4096, 4096
          %272 = vsyncadd [#allocation12], %s271
          %s273 = sshll.u32 [#allocation11], 4
          %s274 = int_to_ptr.vmem [resolvable:$true] %s273
          %279 = dma.hbm_to_vmem [thread:$0]  %s5, 4096, %s274, [#allocation12], 128, 128, 8
        $region32: #{tpu_custom_call.1} parent=11 // pred_fallthru
          _
        // Predicated region
        $region33: #{tpu_custom_call.1} parent=11 // pred_check
          %p280 = pneg %p174
        $region34: #{tpu_custom_call.1} parent=11 // pred_check_branch
          %282 = sbr.rel (%p280) target = $region36
        $region35: #{tpu_custom_call.1} parent=11 // pred_region
          %s284 = ssub.s32 256, 256
          %285 = vsyncadd [#allocation12], %s284
          %s287 = sshll.u32 [#allocation13], 4
          %s288 = int_to_ptr.vmem [resolvable:$true] %s287
          %290 = dma.hbm_to_vmem [thread:$0]  %s6, 256, %s288, [#allocation12]
        $region36: #{tpu_custom_call.1} parent=11 // pred_fallthru
          _
      $region12: #{tpu_custom_call.1} parent=5 // pred_fallthru
        _
      %p291 = scmp.lt.s32.totalorder %s22, 2
      // Predicated region
      $region37: #{tpu_custom_call.1} parent=5 // pred_check
        %p292 = pneg %p291
      $region38: #{tpu_custom_call.1} parent=5 // pred_check_branch
        %294 = sbr.rel (%p292) target = $region40
      $region39: #{tpu_custom_call.1} parent=5 // pred_region
        // Predicated region
        $region41: #{tpu_custom_call.1} parent=39 // pred_check
          %p295 = pneg %p42
        $region42: #{tpu_custom_call.1} parent=39 // pred_check_branch
          %297 = sbr.rel (%p295) target = $region44
        $region43: #{tpu_custom_call.1} parent=39 // pred_region
          %s298 = sand.u32 %s32, 1
          %s299 = scalar_lea.sflag [#allocation3], %s298
          %s300 = sand.u32 %s32, 1
          %s301 = smul.addr %s300, 8
          %s302 = scalar_lea.vmem [#allocation2], %s301
          %s304 = ssub.s32 128, 128
          %305 = vsyncadd %s299, %s304
          %s306 = smul.addr %s22, 128
          %s307 = scalar_lea.hbm %s0, %s306
          %s309 = sshll.u32 %s302, 4
          %s310 = int_to_ptr.vmem [resolvable:$true] %s309
          %312 = dma.hbm_to_vmem [thread:$0]  %s307, 128, %s310, %s299
        $region44: #{tpu_custom_call.1} parent=39 // pred_fallthru
          _
      $region40: #{tpu_custom_call.1} parent=5 // pred_fallthru
        _
      %p313 = scmp.le.s32.totalorder 1, %s22
      %p314 = scmp.lt.s32.totalorder %s22, 3
      %p315 = pnand %p313, %p314
      %p316 = pneg %p315
      // Predicated region
      $region45: #{tpu_custom_call.1} parent=5 // pred_check
        _
      $region46: #{tpu_custom_call.1} parent=5 // pred_check_branch
        %318 = sbr.rel (%p315) target = $region48
      $region47: #{tpu_custom_call.1} parent=5 // pred_region
        %s319 = ssub.s32 %s22, 1
        %s320 = sand.u32 %s35, 1
        %s321 = scalar_lea.sflag [#allocation3], %s320
        %s322 = sand.u32 %s35, 1
        %s323 = smul.addr %s322, 8
        %s324 = scalar_lea.vmem [#allocation2], %s323
        // Predicated region
        $region49: #{tpu_custom_call.1} parent=47 // pred_check
          %p325 = pneg %p48
        $region50: #{tpu_custom_call.1} parent=47 // pred_check_branch
          %327 = sbr.rel (%p325) target = $region52
        $region51: #{tpu_custom_call.1} parent=47 // pred_region
          %328 = dma.done %s321, 128
        $region52: #{tpu_custom_call.1} parent=47 // pred_fallthru
          _
        // Predicated region
        $region53: #{tpu_custom_call.1} parent=47 // pred_check
          %p329 = pneg %p69
        $region54: #{tpu_custom_call.1} parent=47 // pred_check_branch
          %331 = sbr.rel (%p329) target = $region56
        $region55: #{tpu_custom_call.1} parent=47 // pred_region
          %332 = dma.done [#allocation6], 2048
        $region56: #{tpu_custom_call.1} parent=47 // pred_fallthru
          _
        // Predicated region
        $region57: #{tpu_custom_call.1} parent=47 // pred_check
          %p333 = pneg %p90
        $region58: #{tpu_custom_call.1} parent=47 // pred_check_branch
          %335 = sbr.rel (%p333) target = $region60
        $region59: #{tpu_custom_call.1} parent=47 // pred_region
          %336 = dma.done [#allocation6], 8192
        $region60: #{tpu_custom_call.1} parent=47 // pred_fallthru
          _
        // Predicated region
        $region61: #{tpu_custom_call.1} parent=47 // pred_check
          %p337 = pneg %p111
        $region62: #{tpu_custom_call.1} parent=47 // pred_check_branch
          %339 = sbr.rel (%p337) target = $region64
        $region63: #{tpu_custom_call.1} parent=47 // pred_region
          %340 = dma.done [#allocation9], 8192
        $region64: #{tpu_custom_call.1} parent=47 // pred_fallthru
          _
        // Predicated region
        $region65: #{tpu_custom_call.1} parent=47 // pred_check
          %p341 = pneg %p132
        $region66: #{tpu_custom_call.1} parent=47 // pred_check_branch
          %343 = sbr.rel (%p341) target = $region68
        $region67: #{tpu_custom_call.1} parent=47 // pred_region
          %344 = dma.done [#allocation9], 8192
        $region68: #{tpu_custom_call.1} parent=47 // pred_fallthru
          _
        // Predicated region
        $region69: #{tpu_custom_call.1} parent=47 // pred_check
          %p345 = pneg %p153
        $region70: #{tpu_custom_call.1} parent=47 // pred_check_branch
          %347 = sbr.rel (%p345) target = $region72
        $region71: #{tpu_custom_call.1} parent=47 // pred_region
          %348 = dma.done [#allocation12], 4096
        $region72: #{tpu_custom_call.1} parent=47 // pred_fallthru
          _
        // Predicated region
        $region73: #{tpu_custom_call.1} parent=47 // pred_check
          %p349 = pneg %p174
        $region74: #{tpu_custom_call.1} parent=47 // pred_check_branch
          %351 = sbr.rel (%p349) target = $region76
        $region75: #{tpu_custom_call.1} parent=47 // pred_region
          %352 = dma.done [#allocation12], 256
        $region76: #{tpu_custom_call.1} parent=47 // pred_fallthru
          _
        %s353 = sand.u32 %s35, 1
        %s354 = scalar_lea.sflag [#allocation3], %s353
        %s355 = sand.u32 %s35, 1
        %s356 = smul.addr %s355, 8
        %s357 = scalar_lea.vmem [#allocation2], %s356
        %p358 = pneg %p48
        %p359 = pneg %p45
        %p360 = pneg %p69
        %p361 = pneg %p66
        %p362 = pneg %p90
        %p363 = pneg %p87
        %p364 = pneg %p111
        %p365 = pneg %p108
        %p366 = pneg %p132
        %p367 = pneg %p129
        %p368 = pneg %p153
        %p369 = pneg %p150
        %p370 = pneg %p174
        %p371 = pneg %p171
        %p372 = pneg %p200
        %p373 = pneg %p197
        %s374 = sand.u32 %s187, 1
        %s375 = scalar_lea.sflag [#allocation4], %s374
        %s376 = sand.u32 %s187, 1
        %s377 = smul.addr %s376, 8
        %s378 = scalar_lea.vmem [#allocation14], %s377
        %v379 = vld [vmem:[%s324] sm:$0xff]
        %v380 = vld [vmem:[#allocation5] sm:$0xff]
        %v381 = vld [vmem:[#allocation5 + $0x8] sm:$0xff]
        %v382 = vld [vmem:[#allocation5 + $0x10] sm:$0xff]
        %v383 = vld [vmem:[#allocation5 + $0x18] sm:$0xff]
        %v384 = vld [vmem:[#allocation5 + $0x20] sm:$0xff]
        %v385 = vld [vmem:[#allocation5 + $0x28] sm:$0xff]
        %v386 = vld [vmem:[#allocation5 + $0x30] sm:$0xff]
        %v387 = vld [vmem:[#allocation5 + $0x38] sm:$0xff]
        %v388 = vld [vmem:[#allocation5 + $0x40] sm:$0xff]
        %v389 = vld [vmem:[#allocation5 + $0x48] sm:$0xff]
        %v390 = vld [vmem:[#allocation5 + $0x50] sm:$0xff]
        %v391 = vld [vmem:[#allocation5 + $0x58] sm:$0xff]
        %v392 = vld [vmem:[#allocation5 + $0x60] sm:$0xff]
        %v393 = vld [vmem:[#allocation5 + $0x68] sm:$0xff]
        %v394 = vld [vmem:[#allocation5 + $0x70] sm:$0xff]
        %v395 = vld [vmem:[#allocation5 + $0x78] sm:$0xff]
        %v396 = vld [vmem:[#allocation13] ss:$8 sm:$0x3]
        %v398 = vlaneseq
        %v399 = vshrl.u32 %v398, 7
        %v400 = vsub.s32 0, %v399
        %v401 = vrot.slane %v396, %v400
        %v402 = vlaneseq
        %v403 = vshrl.u32 %v402, 7
        %v404 = vsub.s32 1, %v403
        %v405 = vrot.slane %v396, %v404
        %vm408 = vcmask 523264
        %v410 = vsel %vm408, %v379, 0
        %412 = vmatprep.subr.mxu0 0.0
        %413 = vmatpush1.msra.mxu0 0.0
        %414 = vmatprep.subr.mxu0 0.0
        %415 = vmatpush1.msra.mxu0 0.0
        %416 = vmatprep.subr.mxu0 0.0
        %417 = vmatpush1.msra.mxu0 0.0
        %418 = vmatprep.subr.mxu0 0.0
        %419 = vmatpush1.msra.mxu0 0.0
        %420 = vmatprep.subr.mxu0 0.0
        %421 = vmatpush1.msra.mxu0 0.0
        %422 = vmatprep.subr.mxu0 0.0
        %423 = vmatpush1.msra.mxu0 0.0
        %424 = vmatprep.subr.mxu0 0.0
        %425 = vmatpush1.msra.mxu0 0.0
        %426 = vmatprep.subr.mxu0 0.0
        %427 = vmatpush1.msra.mxu0 0.0
        %428 = vmatprep.subr.mxu0 %v395
        %429 = vmatpush1.msra.mxu0 %v394
        %430 = vmatprep.subr.mxu0 %v393
        %431 = vmatpush1.msra.mxu0 %v392
        %432 = vmatprep.subr.mxu0 %v391
        %433 = vmatpush1.msra.mxu0 %v390
        %434 = vmatprep.subr.mxu0 %v389
        %435 = vmatpush1.msra.mxu0 %v388
        %436 = vmatprep.subr.mxu0 %v387
        %437 = vmatpush1.msra.mxu0 %v386
        %438 = vmatprep.subr.mxu0 %v385
        %439 = vmatpush1.msra.mxu0 %v384
        %440 = vmatprep.subr.mxu0 %v383
        %441 = vmatpush1.msra.mxu0 %v382
        %442 = vmatprep.subr.mxu0 %v381
        %443 = vmatpush1.msra.mxu0 %v380
        %444 = vmatprep.subr.mxu0 0.0
        %445 = vmatpush2.msra.mxu0 0.0
        %446 = vmatprep.subr.mxu0 0.0
        %447 = vmatpush2.msra.mxu0 0.0
        %448 = vmatprep.subr.mxu0 0.0
        %449 = vmatpush2.msra.mxu0 0.0
        %450 = vmatprep.subr.mxu0 0.0
        %451 = vmatpush2.msra.mxu0 0.0
        %452 = vmatprep.subr.mxu0 0.0
        %453 = vmatpush2.msra.mxu0 0.0
        %454 = vmatprep.subr.mxu0 0.0
        %455 = vmatpush2.msra.mxu0 0.0
        %456 = vmatprep.subr.mxu0 0.0
        %457 = vmatpush2.msra.mxu0 0.0
        %458 = vmatprep.subr.mxu0 0.0
        %459 = vmatpush2.msra.mxu0 0.0
        %460 = vmatprep.subr.mxu0 0.0
        %461 = vmatpush2.msra.mxu0 0.0
        %462 = vmatprep.subr.mxu0 0.0
        %463 = vmatpush2.msra.mxu0 0.0
        %464 = vmatprep.subr.mxu0 0.0
        %465 = vmatpush2.msra.mxu0 0.0
        %466 = vmatprep.subr.mxu0 0.0
        %467 = vmatpush2.msra.mxu0 0.0
        %468 = vmatprep.subr.mxu0 0.0
        %469 = vmatpush2.msra.mxu0 0.0
        %470 = vmatprep.subr.mxu0 0.0
        %471 = vmatpush2.msra.mxu0 0.0
        %472 = vmatprep.subr.mxu0 0.0
        %473 = vmatpush2.msra.mxu0 0.0
        %474 = vmatprep.subr.mxu0 0.0
        %475 = vmatpush2.msra.mxu0 0.0
        %476 = vmatprep.mubr.f32.mxu0 0.0
        %477 = vmatmul.mubr.f32.gmra.mxu0 %v410
        %v478 = vpop.f32.mrf.mxu0
        %v479 = vadd.f32 %v401, %v478
        %v480 = vpop.f32.mrf.mxu0
        %v481 = vadd.f32 %v405, %v480
        %482 = vdwg.mxu0
        %v483 = vmul.f32 %v479, 0.05
        %v484 = vmul.f32 %v481, 0.05
        %v485 = vmax.f32 %v479, %v483
        %v486 = vmax.f32 %v481, %v484
        %v487 = vld [vmem:[#allocation7] sm:$0xff]
        %v488 = vld [vmem:[#allocation7 + $0x8] sm:$0xff]
        %v489 = vld [vmem:[#allocation7 + $0x10] sm:$0xff]
        %v490 = vld [vmem:[#allocation7 + $0x18] sm:$0xff]
        %v491 = vld [vmem:[#allocation7 + $0x20] sm:$0xff]
        %v492 = vld [vmem:[#allocation7 + $0x28] sm:$0xff]
        %v493 = vld [vmem:[#allocation7 + $0x30] sm:$0xff]
        %v494 = vld [vmem:[#allocation7 + $0x38] sm:$0xff]
        %v495 = vld [vmem:[#allocation7 + $0x40] sm:$0xff]
        %v496 = vld [vmem:[#allocation7 + $0x48] sm:$0xff]
        %v497 = vld [vmem:[#allocation7 + $0x50] sm:$0xff]
        %v498 = vld [vmem:[#allocation7 + $0x58] sm:$0xff]
        %v499 = vld [vmem:[#allocation7 + $0x60] sm:$0xff]
        %v500 = vld [vmem:[#allocation7 + $0x68] sm:$0xff]
        %v501 = vld [vmem:[#allocation7 + $0x70] sm:$0xff]
        %v502 = vld [vmem:[#allocation7 + $0x78] sm:$0xff]
        %v503 = vld [vmem:[#allocation7 + $0x80] sm:$0xff]
        %v504 = vld [vmem:[#allocation7 + $0x88] sm:$0xff]
        %v505 = vld [vmem:[#allocation7 + $0x90] sm:$0xff]
        %v506 = vld [vmem:[#allocation7 + $0x98] sm:$0xff]
        %v507 = vld [vmem:[#allocation7 + $0xa0] sm:$0xff]
        %v508 = vld [vmem:[#allocation7 + $0xa8] sm:$0xff]
        %v509 = vld [vmem:[#allocation7 + $0xb0] sm:$0xff]
        %v510 = vld [vmem:[#allocation7 + $0xb8] sm:$0xff]
        %v511 = vld [vmem:[#allocation7 + $0xc0] sm:$0xff]
        %v512 = vld [vmem:[#allocation7 + $0xc8] sm:$0xff]
        %v513 = vld [vmem:[#allocation7 + $0xd0] sm:$0xff]
        %v514 = vld [vmem:[#allocation7 + $0xd8] sm:$0xff]
        %v515 = vld [vmem:[#allocation7 + $0xe0] sm:$0xff]
        %v516 = vld [vmem:[#allocation7 + $0xe8] sm:$0xff]
        %v517 = vld [vmem:[#allocation7 + $0xf0] sm:$0xff]
        %v518 = vld [vmem:[#allocation7 + $0xf8] sm:$0xff]
        %v519 = vld [vmem:[#allocation7 + $0x100] sm:$0xff]
        %v520 = vld [vmem:[#allocation7 + $0x108] sm:$0xff]
        %v521 = vld [vmem:[#allocation7 + $0x110] sm:$0xff]
        %v522 = vld [vmem:[#allocation7 + $0x118] sm:$0xff]
        %v523 = vld [vmem:[#allocation7 + $0x120] sm:$0xff]
        %v524 = vld [vmem:[#allocation7 + $0x128] sm:$0xff]
        %v525 = vld [vmem:[#allocation7 + $0x130] sm:$0xff]
        %v526 = vld [vmem:[#allocation7 + $0x138] sm:$0xff]
        %v527 = vld [vmem:[#allocation7 + $0x140] sm:$0xff]
        %v528 = vld [vmem:[#allocation7 + $0x148] sm:$0xff]
        %v529 = vld [vmem:[#allocation7 + $0x150] sm:$0xff]
        %v530 = vld [vmem:[#allocation7 + $0x158] sm:$0xff]
        %v531 = vld [vmem:[#allocation7 + $0x160] sm:$0xff]
        %v532 = vld [vmem:[#allocation7 + $0x168] sm:$0xff]
        %v533 = vld [vmem:[#allocation7 + $0x170] sm:$0xff]
        %v534 = vld [vmem:[#allocation7 + $0x178] sm:$0xff]
        %v535 = vld [vmem:[#allocation7 + $0x180] sm:$0xff]
        %v536 = vld [vmem:[#allocation7 + $0x188] sm:$0xff]
        %v537 = vld [vmem:[#allocation7 + $0x190] sm:$0xff]
        %v538 = vld [vmem:[#allocation7 + $0x198] sm:$0xff]
        %v539 = vld [vmem:[#allocation7 + $0x1a0] sm:$0xff]
        %v540 = vld [vmem:[#allocation7 + $0x1a8] sm:$0xff]
        %v541 = vld [vmem:[#allocation7 + $0x1b0] sm:$0xff]
        %v542 = vld [vmem:[#allocation7 + $0x1b8] sm:$0xff]
        %v543 = vld [vmem:[#allocation7 + $0x1c0] sm:$0xff]
        %v544 = vld [vmem:[#allocation7 + $0x1c8] sm:$0xff]
        %v545 = vld [vmem:[#allocation7 + $0x1d0] sm:$0xff]
        %v546 = vld [vmem:[#allocation7 + $0x1d8] sm:$0xff]
        %v547 = vld [vmem:[#allocation7 + $0x1e0] sm:$0xff]
        %v548 = vld [vmem:[#allocation7 + $0x1e8] sm:$0xff]
        %v549 = vld [vmem:[#allocation7 + $0x1f0] sm:$0xff]
        %v550 = vld [vmem:[#allocation7 + $0x1f8] sm:$0xff]
        %s551 = scalar_lea.vmem [#allocation13], 1
        %v552 = vld [vmem:[%s551] ss:$8 sm:$0x3]
        %v554 = vlaneseq
        %v555 = vshrl.u32 %v554, 7
        %v556 = vsub.s32 0, %v555
        %v557 = vrot.slane %v552, %v556
        %v558 = vlaneseq
        %v559 = vshrl.u32 %v558, 7
        %v560 = vsub.s32 1, %v559
        %v561 = vrot.slane %v552, %v560
        %564 = vmatprep.subr.mxu0 %v518
        %565 = vmatpush1.msra.mxu0 %v517
        %566 = vmatprep.subr.mxu0 %v516
        %567 = vmatpush1.msra.mxu0 %v515
        %568 = vmatprep.subr.mxu0 %v514
        %569 = vmatpush1.msra.mxu0 %v513
        %570 = vmatprep.subr.mxu0 %v512
        %571 = vmatpush1.msra.mxu0 %v511
        %572 = vmatprep.subr.mxu0 %v510
        %573 = vmatpush1.msra.mxu0 %v509
        %574 = vmatprep.subr.mxu0 %v508
        %575 = vmatpush1.msra.mxu0 %v507
        %576 = vmatprep.subr.mxu0 %v506
        %577 = vmatpush1.msra.mxu0 %v505
        %578 = vmatprep.subr.mxu0 %v504
        %579 = vmatpush1.msra.mxu0 %v503
        %580 = vmatprep.subr.mxu0 %v502
        %581 = vmatpush1.msra.mxu0 %v501
        %582 = vmatprep.subr.mxu0 %v500
        %583 = vmatpush1.msra.mxu0 %v499
        %584 = vmatprep.subr.mxu0 %v498
        %585 = vmatpush1.msra.mxu0 %v497
        %586 = vmatprep.subr.mxu0 %v496
        %587 = vmatpush1.msra.mxu0 %v495
        %588 = vmatprep.subr.mxu0 %v494
        %589 = vmatpush1.msra.mxu0 %v493
        %590 = vmatprep.subr.mxu0 %v492
        %591 = vmatpush1.msra.mxu0 %v491
        %592 = vmatprep.subr.mxu0 %v490
        %593 = vmatpush1.msra.mxu0 %v489
        %594 = vmatprep.subr.mxu0 %v488
        %595 = vmatpush1.msra.mxu0 %v487
        %596 = vmatprep.subr.mxu0 %v550
        %597 = vmatpush2.msra.mxu0 %v549
        %598 = vmatprep.subr.mxu0 %v548
        %599 = vmatpush2.msra.mxu0 %v547
        %600 = vmatprep.subr.mxu0 %v546
        %601 = vmatpush2.msra.mxu0 %v545
        %602 = vmatprep.subr.mxu0 %v544
        %603 = vmatpush2.msra.mxu0 %v543
        %604 = vmatprep.subr.mxu0 %v542
        %605 = vmatpush2.msra.mxu0 %v541
        %606 = vmatprep.subr.mxu0 %v540
        %607 = vmatpush2.msra.mxu0 %v539
        %608 = vmatprep.subr.mxu0 %v538
        %609 = vmatpush2.msra.mxu0 %v537
        %610 = vmatprep.subr.mxu0 %v536
        %611 = vmatpush2.msra.mxu0 %v535
        %612 = vmatprep.subr.mxu0 %v534
        %613 = vmatpush2.msra.mxu0 %v533
        %614 = vmatprep.subr.mxu0 %v532
        %615 = vmatpush2.msra.mxu0 %v531
        %616 = vmatprep.subr.mxu0 %v530
        %617 = vmatpush2.msra.mxu0 %v529
        %618 = vmatprep.subr.mxu0 %v528
        %619 = vmatpush2.msra.mxu0 %v527
        %620 = vmatprep.subr.mxu0 %v526
        %621 = vmatpush2.msra.mxu0 %v525
        %622 = vmatprep.subr.mxu0 %v524
        %623 = vmatpush2.msra.mxu0 %v523
        %624 = vmatprep.subr.mxu0 %v522
        %625 = vmatpush2.msra.mxu0 %v521
        %626 = vmatprep.subr.mxu0 %v520
        %627 = vmatpush2.msra.mxu0 %v519
        %628 = vmatprep.mubr.f32.mxu0 %v486
        %629 = vmatmul.mubr.f32.gmra.mxu0 %v485
        %v630 = vpop.f32.mrf.mxu0
        %v631 = vadd.f32 %v557, %v630
        %v632 = vpop.f32.mrf.mxu0
        %v633 = vadd.f32 %v561, %v632
        %634 = vdwg.mxu0
        %v635 = vmul.f32 %v631, 0.05
        %v636 = vmul.f32 %v633, 0.05
        %v637 = vmax.f32 %v631, %v635
        %v638 = vmax.f32 %v633, %v636
        %v639 = vld [vmem:[#allocation8] sm:$0xff]
        %v640 = vld [vmem:[#allocation8 + $0x8] sm:$0xff]
        %v641 = vld [vmem:[#allocation8 + $0x10] sm:$0xff]
        %v642 = vld [vmem:[#allocation8 + $0x18] sm:$0xff]
        %v643 = vld [vmem:[#allocation8 + $0x20] sm:$0xff]
        %v644 = vld [vmem:[#allocation8 + $0x28] sm:$0xff]
        %v645 = vld [vmem:[#allocation8 + $0x30] sm:$0xff]
        %v646 = vld [vmem:[#allocation8 + $0x38] sm:$0xff]
        %v647 = vld [vmem:[#allocation8 + $0x40] sm:$0xff]
        %v648 = vld [vmem:[#allocation8 + $0x48] sm:$0xff]
        %v649 = vld [vmem:[#allocation8 + $0x50] sm:$0xff]
        %v650 = vld [vmem:[#allocation8 + $0x58] sm:$0xff]
        %v651 = vld [vmem:[#allocation8 + $0x60] sm:$0xff]
        %v652 = vld [vmem:[#allocation8 + $0x68] sm:$0xff]
        %v653 = vld [vmem:[#allocation8 + $0x70] sm:$0xff]
        %v654 = vld [vmem:[#allocation8 + $0x78] sm:$0xff]
        %v655 = vld [vmem:[#allocation8 + $0x80] sm:$0xff]
        %v656 = vld [vmem:[#allocation8 + $0x88] sm:$0xff]
        %v657 = vld [vmem:[#allocation8 + $0x90] sm:$0xff]
        %v658 = vld [vmem:[#allocation8 + $0x98] sm:$0xff]
        %v659 = vld [vmem:[#allocation8 + $0xa0] sm:$0xff]
        %v660 = vld [vmem:[#allocation8 + $0xa8] sm:$0xff]
        %v661 = vld [vmem:[#allocation8 + $0xb0] sm:$0xff]
        %v662 = vld [vmem:[#allocation8 + $0xb8] sm:$0xff]
        %v663 = vld [vmem:[#allocation8 + $0xc0] sm:$0xff]
        %v664 = vld [vmem:[#allocation8 + $0xc8] sm:$0xff]
        %v665 = vld [vmem:[#allocation8 + $0xd0] sm:$0xff]
        %v666 = vld [vmem:[#allocation8 + $0xd8] sm:$0xff]
        %v667 = vld [vmem:[#allocation8 + $0xe0] sm:$0xff]
        %v668 = vld [vmem:[#allocation8 + $0xe8] sm:$0xff]
        %v669 = vld [vmem:[#allocation8 + $0xf0] sm:$0xff]
        %v670 = vld [vmem:[#allocation8 + $0xf8] sm:$0xff]
        %v671 = vld [vmem:[#allocation8 + $0x100] sm:$0xff]
        %v672 = vld [vmem:[#allocation8 + $0x108] sm:$0xff]
        %v673 = vld [vmem:[#allocation8 + $0x110] sm:$0xff]
        %v674 = vld [vmem:[#allocation8 + $0x118] sm:$0xff]
        %v675 = vld [vmem:[#allocation8 + $0x120] sm:$0xff]
        %v676 = vld [vmem:[#allocation8 + $0x128] sm:$0xff]
        %v677 = vld [vmem:[#allocation8 + $0x130] sm:$0xff]
        %v678 = vld [vmem:[#allocation8 + $0x138] sm:$0xff]
        %v679 = vld [vmem:[#allocation8 + $0x140] sm:$0xff]
        %v680 = vld [vmem:[#allocation8 + $0x148] sm:$0xff]
        %v681 = vld [vmem:[#allocation8 + $0x150] sm:$0xff]
        %v682 = vld [vmem:[#allocation8 + $0x158] sm:$0xff]
        %v683 = vld [vmem:[#allocation8 + $0x160] sm:$0xff]
        %v684 = vld [vmem:[#allocation8 + $0x168] sm:$0xff]
        %v685 = vld [vmem:[#allocation8 + $0x170] sm:$0xff]
        %v686 = vld [vmem:[#allocation8 + $0x178] sm:$0xff]
        %v687 = vld [vmem:[#allocation8 + $0x180] sm:$0xff]
        %v688 = vld [vmem:[#allocation8 + $0x188] sm:$0xff]
        %v689 = vld [vmem:[#allocation8 + $0x190] sm:$0xff]
        %v690 = vld [vmem:[#allocation8 + $0x198] sm:$0xff]
        %v691 = vld [vmem:[#allocation8 + $0x1a0] sm:$0xff]
        %v692 = vld [vmem:[#allocation8 + $0x1a8] sm:$0xff]
        %v693 = vld [vmem:[#allocation8 + $0x1b0] sm:$0xff]
        %v694 = vld [vmem:[#allocation8 + $0x1b8] sm:$0xff]
        %v695 = vld [vmem:[#allocation8 + $0x1c0] sm:$0xff]
        %v696 = vld [vmem:[#allocation8 + $0x1c8] sm:$0xff]
        %v697 = vld [vmem:[#allocation8 + $0x1d0] sm:$0xff]
        %v698 = vld [vmem:[#allocation8 + $0x1d8] sm:$0xff]
        %v699 = vld [vmem:[#allocation8 + $0x1e0] sm:$0xff]
        %v700 = vld [vmem:[#allocation8 + $0x1e8] sm:$0xff]
        %v701 = vld [vmem:[#allocation8 + $0x1f0] sm:$0xff]
        %v702 = vld [vmem:[#allocation8 + $0x1f8] sm:$0xff]
        %s703 = scalar_lea.vmem [#allocation13], 2
        %v704 = vld [vmem:[%s703] ss:$8 sm:$0x3]
        %v706 = vlaneseq
        %v707 = vshrl.u32 %v706, 7
        %v708 = vsub.s32 0, %v707
        %v709 = vrot.slane %v704, %v708
        %v710 = vlaneseq
        %v711 = vshrl.u32 %v710, 7
        %v712 = vsub.s32 1, %v711
        %v713 = vrot.slane %v704, %v712
        %716 = vmatprep.subr.mxu0 %v670
        %717 = vmatpush1.msra.mxu0 %v669
        %718 = vmatprep.subr.mxu0 %v668
        %719 = vmatpush1.msra.mxu0 %v667
        %720 = vmatprep.subr.mxu0 %v666
        %721 = vmatpush1.msra.mxu0 %v665
        %722 = vmatprep.subr.mxu0 %v664
        %723 = vmatpush1.msra.mxu0 %v663
        %724 = vmatprep.subr.mxu0 %v662
        %725 = vmatpush1.msra.mxu0 %v661
        %726 = vmatprep.subr.mxu0 %v660
        %727 = vmatpush1.msra.mxu0 %v659
        %728 = vmatprep.subr.mxu0 %v658
        %729 = vmatpush1.msra.mxu0 %v657
        %730 = vmatprep.subr.mxu0 %v656
        %731 = vmatpush1.msra.mxu0 %v655
        %732 = vmatprep.subr.mxu0 %v654
        %733 = vmatpush1.msra.mxu0 %v653
        %734 = vmatprep.subr.mxu0 %v652
        %735 = vmatpush1.msra.mxu0 %v651
        %736 = vmatprep.subr.mxu0 %v650
        %737 = vmatpush1.msra.mxu0 %v649
        %738 = vmatprep.subr.mxu0 %v648
        %739 = vmatpush1.msra.mxu0 %v647
        %740 = vmatprep.subr.mxu0 %v646
        %741 = vmatpush1.msra.mxu0 %v645
        %742 = vmatprep.subr.mxu0 %v644
        %743 = vmatpush1.msra.mxu0 %v643
        %744 = vmatprep.subr.mxu0 %v642
        %745 = vmatpush1.msra.mxu0 %v641
        %746 = vmatprep.subr.mxu0 %v640
        %747 = vmatpush1.msra.mxu0 %v639
        %748 = vmatprep.subr.mxu0 %v702
        %749 = vmatpush2.msra.mxu0 %v701
        %750 = vmatprep.subr.mxu0 %v700
        %751 = vmatpush2.msra.mxu0 %v699
        %752 = vmatprep.subr.mxu0 %v698
        %753 = vmatpush2.msra.mxu0 %v697
        %754 = vmatprep.subr.mxu0 %v696
        %755 = vmatpush2.msra.mxu0 %v695
        %756 = vmatprep.subr.mxu0 %v694
        %757 = vmatpush2.msra.mxu0 %v693
        %758 = vmatprep.subr.mxu0 %v692
        %759 = vmatpush2.msra.mxu0 %v691
        %760 = vmatprep.subr.mxu0 %v690
        %761 = vmatpush2.msra.mxu0 %v689
        %762 = vmatprep.subr.mxu0 %v688
        %763 = vmatpush2.msra.mxu0 %v687
        %764 = vmatprep.subr.mxu0 %v686
        %765 = vmatpush2.msra.mxu0 %v685
        %766 = vmatprep.subr.mxu0 %v684
        %767 = vmatpush2.msra.mxu0 %v683
        %768 = vmatprep.subr.mxu0 %v682
        %769 = vmatpush2.msra.mxu0 %v681
        %770 = vmatprep.subr.mxu0 %v680
        %771 = vmatpush2.msra.mxu0 %v679
        %772 = vmatprep.subr.mxu0 %v678
        %773 = vmatpush2.msra.mxu0 %v677
        %774 = vmatprep.subr.mxu0 %v676
        %775 = vmatpush2.msra.mxu0 %v675
        %776 = vmatprep.subr.mxu0 %v674
        %777 = vmatpush2.msra.mxu0 %v673
        %778 = vmatprep.subr.mxu0 %v672
        %779 = vmatpush2.msra.mxu0 %v671
        %780 = vmatprep.mubr.f32.mxu0 %v638
        %781 = vmatmul.mubr.f32.gmra.mxu0 %v637
        %v782 = vpop.f32.mrf.mxu0
        %v783 = vadd.f32 %v709, %v782
        %v784 = vpop.f32.mrf.mxu0
        %v785 = vadd.f32 %v713, %v784
        %786 = vdwg.mxu0
        %v787 = vld [vmem:[#allocation10] sm:$0xff]
        %v788 = vld [vmem:[#allocation10 + $0x8] sm:$0xff]
        %v789 = vld [vmem:[#allocation10 + $0x10] sm:$0xff]
        %v790 = vld [vmem:[#allocation10 + $0x18] sm:$0xff]
        %v791 = vld [vmem:[#allocation10 + $0x20] sm:$0xff]
        %v792 = vld [vmem:[#allocation10 + $0x28] sm:$0xff]
        %v793 = vld [vmem:[#allocation10 + $0x30] sm:$0xff]
        %v794 = vld [vmem:[#allocation10 + $0x38] sm:$0xff]
        %v795 = vld [vmem:[#allocation10 + $0x40] sm:$0xff]
        %v796 = vld [vmem:[#allocation10 + $0x48] sm:$0xff]
        %v797 = vld [vmem:[#allocation10 + $0x50] sm:$0xff]
        %v798 = vld [vmem:[#allocation10 + $0x58] sm:$0xff]
        %v799 = vld [vmem:[#allocation10 + $0x60] sm:$0xff]
        %v800 = vld [vmem:[#allocation10 + $0x68] sm:$0xff]
        %v801 = vld [vmem:[#allocation10 + $0x70] sm:$0xff]
        %v802 = vld [vmem:[#allocation10 + $0x78] sm:$0xff]
        %v803 = vld [vmem:[#allocation10 + $0x80] sm:$0xff]
        %v804 = vld [vmem:[#allocation10 + $0x88] sm:$0xff]
        %v805 = vld [vmem:[#allocation10 + $0x90] sm:$0xff]
        %v806 = vld [vmem:[#allocation10 + $0x98] sm:$0xff]
        %v807 = vld [vmem:[#allocation10 + $0xa0] sm:$0xff]
        %v808 = vld [vmem:[#allocation10 + $0xa8] sm:$0xff]
        %v809 = vld [vmem:[#allocation10 + $0xb0] sm:$0xff]
        %v810 = vld [vmem:[#allocation10 + $0xb8] sm:$0xff]
        %v811 = vld [vmem:[#allocation10 + $0xc0] sm:$0xff]
        %v812 = vld [vmem:[#allocation10 + $0xc8] sm:$0xff]
        %v813 = vld [vmem:[#allocation10 + $0xd0] sm:$0xff]
        %v814 = vld [vmem:[#allocation10 + $0xd8] sm:$0xff]
        %v815 = vld [vmem:[#allocation10 + $0xe0] sm:$0xff]
        %v816 = vld [vmem:[#allocation10 + $0xe8] sm:$0xff]
        %v817 = vld [vmem:[#allocation10 + $0xf0] sm:$0xff]
        %v818 = vld [vmem:[#allocation10 + $0xf8] sm:$0xff]
        %v819 = vld [vmem:[#allocation10 + $0x100] sm:$0xff]
        %v820 = vld [vmem:[#allocation10 + $0x108] sm:$0xff]
        %v821 = vld [vmem:[#allocation10 + $0x110] sm:$0xff]
        %v822 = vld [vmem:[#allocation10 + $0x118] sm:$0xff]
        %v823 = vld [vmem:[#allocation10 + $0x120] sm:$0xff]
        %v824 = vld [vmem:[#allocation10 + $0x128] sm:$0xff]
        %v825 = vld [vmem:[#allocation10 + $0x130] sm:$0xff]
        %v826 = vld [vmem:[#allocation10 + $0x138] sm:$0xff]
        %v827 = vld [vmem:[#allocation10 + $0x140] sm:$0xff]
        %v828 = vld [vmem:[#allocation10 + $0x148] sm:$0xff]
        %v829 = vld [vmem:[#allocation10 + $0x150] sm:$0xff]
        %v830 = vld [vmem:[#allocation10 + $0x158] sm:$0xff]
        %v831 = vld [vmem:[#allocation10 + $0x160] sm:$0xff]
        %v832 = vld [vmem:[#allocation10 + $0x168] sm:$0xff]
        %v833 = vld [vmem:[#allocation10 + $0x170] sm:$0xff]
        %v834 = vld [vmem:[#allocation10 + $0x178] sm:$0xff]
        %v835 = vld [vmem:[#allocation10 + $0x180] sm:$0xff]
        %v836 = vld [vmem:[#allocation10 + $0x188] sm:$0xff]
        %v837 = vld [vmem:[#allocation10 + $0x190] sm:$0xff]
        %v838 = vld [vmem:[#allocation10 + $0x198] sm:$0xff]
        %v839 = vld [vmem:[#allocation10 + $0x1a0] sm:$0xff]
        %v840 = vld [vmem:[#allocation10 + $0x1a8] sm:$0xff]
        %v841 = vld [vmem:[#allocation10 + $0x1b0] sm:$0xff]
        %v842 = vld [vmem:[#allocation10 + $0x1b8] sm:$0xff]
        %v843 = vld [vmem:[#allocation10 + $0x1c0] sm:$0xff]
        %v844 = vld [vmem:[#allocation10 + $0x1c8] sm:$0xff]
        %v845 = vld [vmem:[#allocation10 + $0x1d0] sm:$0xff]
        %v846 = vld [vmem:[#allocation10 + $0x1d8] sm:$0xff]
        %v847 = vld [vmem:[#allocation10 + $0x1e0] sm:$0xff]
        %v848 = vld [vmem:[#allocation10 + $0x1e8] sm:$0xff]
        %v849 = vld [vmem:[#allocation10 + $0x1f0] sm:$0xff]
        %v850 = vld [vmem:[#allocation10 + $0x1f8] sm:$0xff]
        %s851 = scalar_lea.vmem [#allocation13], 3
        %v852 = vld [vmem:[%s851] ss:$8 sm:$0x3]
        %v854 = vlaneseq
        %v855 = vshrl.u32 %v854, 7
        %v856 = vsub.s32 0, %v855
        %v857 = vrot.slane %v852, %v856
        %v858 = vlaneseq
        %v859 = vshrl.u32 %v858, 7
        %v860 = vsub.s32 1, %v859
        %v861 = vrot.slane %v852, %v860
        %864 = vmatprep.subr.mxu0 %v818
        %865 = vmatpush1.msra.mxu0 %v817
        %866 = vmatprep.subr.mxu0 %v816
        %867 = vmatpush1.msra.mxu0 %v815
        %868 = vmatprep.subr.mxu0 %v814
        %869 = vmatpush1.msra.mxu0 %v813
        %870 = vmatprep.subr.mxu0 %v812
        %871 = vmatpush1.msra.mxu0 %v811
        %872 = vmatprep.subr.mxu0 %v810
        %873 = vmatpush1.msra.mxu0 %v809
        %874 = vmatprep.subr.mxu0 %v808
        %875 = vmatpush1.msra.mxu0 %v807
        %876 = vmatprep.subr.mxu0 %v806
        %877 = vmatpush1.msra.mxu0 %v805
        %878 = vmatprep.subr.mxu0 %v804
        %879 = vmatpush1.msra.mxu0 %v803
        %880 = vmatprep.subr.mxu0 %v802
        %881 = vmatpush1.msra.mxu0 %v801
        %882 = vmatprep.subr.mxu0 %v800
        %883 = vmatpush1.msra.mxu0 %v799
        %884 = vmatprep.subr.mxu0 %v798
        %885 = vmatpush1.msra.mxu0 %v797
        %886 = vmatprep.subr.mxu0 %v796
        %887 = vmatpush1.msra.mxu0 %v795
        %888 = vmatprep.subr.mxu0 %v794
        %889 = vmatpush1.msra.mxu0 %v793
        %890 = vmatprep.subr.mxu0 %v792
        %891 = vmatpush1.msra.mxu0 %v791
        %892 = vmatprep.subr.mxu0 %v790
        %893 = vmatpush1.msra.mxu0 %v789
        %894 = vmatprep.subr.mxu0 %v788
        %895 = vmatpush1.msra.mxu0 %v787
        %896 = vmatprep.subr.mxu0 %v850
        %897 = vmatpush2.msra.mxu0 %v849
        %898 = vmatprep.subr.mxu0 %v848
        %899 = vmatpush2.msra.mxu0 %v847
        %900 = vmatprep.subr.mxu0 %v846
        %901 = vmatpush2.msra.mxu0 %v845
        %902 = vmatprep.subr.mxu0 %v844
        %903 = vmatpush2.msra.mxu0 %v843
        %904 = vmatprep.subr.mxu0 %v842
        %905 = vmatpush2.msra.mxu0 %v841
        %906 = vmatprep.subr.mxu0 %v840
        %907 = vmatpush2.msra.mxu0 %v839
        %908 = vmatprep.subr.mxu0 %v838
        %909 = vmatpush2.msra.mxu0 %v837
        %910 = vmatprep.subr.mxu0 %v836
        %911 = vmatpush2.msra.mxu0 %v835
        %912 = vmatprep.subr.mxu0 %v834
        %913 = vmatpush2.msra.mxu0 %v833
        %914 = vmatprep.subr.mxu0 %v832
        %915 = vmatpush2.msra.mxu0 %v831
        %916 = vmatprep.subr.mxu0 %v830
        %917 = vmatpush2.msra.mxu0 %v829
        %918 = vmatprep.subr.mxu0 %v828
        %919 = vmatpush2.msra.mxu0 %v827
        %920 = vmatprep.subr.mxu0 %v826
        %921 = vmatpush2.msra.mxu0 %v825
        %922 = vmatprep.subr.mxu0 %v824
        %923 = vmatpush2.msra.mxu0 %v823
        %924 = vmatprep.subr.mxu0 %v822
        %925 = vmatpush2.msra.mxu0 %v821
        %926 = vmatprep.subr.mxu0 %v820
        %927 = vmatpush2.msra.mxu0 %v819
        %928 = vmatprep.mubr.f32.mxu0 %v785
        %929 = vmatmul.mubr.f32.gmra.mxu0 %v783
        %v930 = vpop.f32.mrf.mxu0
        %v931 = vadd.f32 %v857, %v930
        %v932 = vpop.f32.mrf.mxu0
        %v933 = vadd.f32 %v861, %v932
        %934 = vdwg.mxu0
        %v935 = vmul.f32 %v931, 0.05
        %v936 = vmul.f32 %v933, 0.05
        %v937 = vmax.f32 %v931, %v935
        %v938 = vmax.f32 %v933, %v936
        %v939 = vld [vmem:[#allocation11] sm:$0xff]
        %v940 = vld [vmem:[#allocation11 + $0x8] sm:$0xff]
        %v941 = vld [vmem:[#allocation11 + $0x10] sm:$0xff]
        %v942 = vld [vmem:[#allocation11 + $0x18] sm:$0xff]
        %v943 = vld [vmem:[#allocation11 + $0x20] sm:$0xff]
        %v944 = vld [vmem:[#allocation11 + $0x28] sm:$0xff]
        %v945 = vld [vmem:[#allocation11 + $0x30] sm:$0xff]
        %v946 = vld [vmem:[#allocation11 + $0x38] sm:$0xff]
        %v947 = vld [vmem:[#allocation11 + $0x40] sm:$0xff]
        %v948 = vld [vmem:[#allocation11 + $0x48] sm:$0xff]
        %v949 = vld [vmem:[#allocation11 + $0x50] sm:$0xff]
        %v950 = vld [vmem:[#allocation11 + $0x58] sm:$0xff]
        %v951 = vld [vmem:[#allocation11 + $0x60] sm:$0xff]
        %v952 = vld [vmem:[#allocation11 + $0x68] sm:$0xff]
        %v953 = vld [vmem:[#allocation11 + $0x70] sm:$0xff]
        %v954 = vld [vmem:[#allocation11 + $0x78] sm:$0xff]
        %v955 = vld [vmem:[#allocation11 + $0x80] sm:$0xff]
        %v956 = vld [vmem:[#allocation11 + $0x88] sm:$0xff]
        %v957 = vld [vmem:[#allocation11 + $0x90] sm:$0xff]
        %v958 = vld [vmem:[#allocation11 + $0x98] sm:$0xff]
        %v959 = vld [vmem:[#allocation11 + $0xa0] sm:$0xff]
        %v960 = vld [vmem:[#allocation11 + $0xa8] sm:$0xff]
        %v961 = vld [vmem:[#allocation11 + $0xb0] sm:$0xff]
        %v962 = vld [vmem:[#allocation11 + $0xb8] sm:$0xff]
        %v963 = vld [vmem:[#allocation11 + $0xc0] sm:$0xff]
        %v964 = vld [vmem:[#allocation11 + $0xc8] sm:$0xff]
        %v965 = vld [vmem:[#allocation11 + $0xd0] sm:$0xff]
        %v966 = vld [vmem:[#allocation11 + $0xd8] sm:$0xff]
        %v967 = vld [vmem:[#allocation11 + $0xe0] sm:$0xff]
        %v968 = vld [vmem:[#allocation11 + $0xe8] sm:$0xff]
        %v969 = vld [vmem:[#allocation11 + $0xf0] sm:$0xff]
        %v970 = vld [vmem:[#allocation11 + $0xf8] sm:$0xff]
        %v971 = vld [vmem:[#allocation13 + $0x4] ss:$0 sm:$0xff]
        %972 = vmatprep.subr.mxu0 0.0
        %973 = vmatpush1.msra.mxu0 %v954
        %974 = vmatprep.subr.mxu0 0.0
        %975 = vmatpush1.msra.mxu0 %v953
        %976 = vmatprep.subr.mxu0 0.0
        %977 = vmatpush1.msra.mxu0 %v952
        %978 = vmatprep.subr.mxu0 0.0
        %979 = vmatpush1.msra.mxu0 %v951
        %980 = vmatprep.subr.mxu0 0.0
        %981 = vmatpush1.msra.mxu0 %v950
        %982 = vmatprep.subr.mxu0 0.0
        %983 = vmatpush1.msra.mxu0 %v949
        %984 = vmatprep.subr.mxu0 0.0
        %985 = vmatpush1.msra.mxu0 %v948
        %986 = vmatprep.subr.mxu0 0.0
        %987 = vmatpush1.msra.mxu0 %v947
        %988 = vmatprep.subr.mxu0 0.0
        %989 = vmatpush1.msra.mxu0 %v946
        %990 = vmatprep.subr.mxu0 0.0
        %991 = vmatpush1.msra.mxu0 %v945
        %992 = vmatprep.subr.mxu0 0.0
        %993 = vmatpush1.msra.mxu0 %v944
        %994 = vmatprep.subr.mxu0 0.0
        %995 = vmatpush1.msra.mxu0 %v943
        %996 = vmatprep.subr.mxu0 0.0
        %997 = vmatpush1.msra.mxu0 %v942
        %998 = vmatprep.subr.mxu0 0.0
        %999 = vmatpush1.msra.mxu0 %v941
        %1000 = vmatprep.subr.mxu0 0.0
        %1001 = vmatpush1.msra.mxu0 %v940
        %1002 = vmatprep.subr.mxu0 0.0
        %1003 = vmatpush1.msra.mxu0 %v939
        %1004 = vmatprep.subr.mxu0 0.0
        %1005 = vmatpush2.msra.mxu0 %v970
        %1006 = vmatprep.subr.mxu0 0.0
        %1007 = vmatpush2.msra.mxu0 %v969
        %1008 = vmatprep.subr.mxu0 0.0
        %1009 = vmatpush2.msra.mxu0 %v968
        %1010 = vmatprep.subr.mxu0 0.0
        %1011 = vmatpush2.msra.mxu0 %v967
        %1012 = vmatprep.subr.mxu0 0.0
        %1013 = vmatpush2.msra.mxu0 %v966
        %1014 = vmatprep.subr.mxu0 0.0
        %1015 = vmatpush2.msra.mxu0 %v965
        %1016 = vmatprep.subr.mxu0 0.0
        %1017 = vmatpush2.msra.mxu0 %v964
        %1018 = vmatprep.subr.mxu0 0.0
        %1019 = vmatpush2.msra.mxu0 %v963
        %1020 = vmatprep.subr.mxu0 0.0
        %1021 = vmatpush2.msra.mxu0 %v962
        %1022 = vmatprep.subr.mxu0 0.0
        %1023 = vmatpush2.msra.mxu0 %v961
        %1024 = vmatprep.subr.mxu0 0.0
        %1025 = vmatpush2.msra.mxu0 %v960
        %1026 = vmatprep.subr.mxu0 0.0
        %1027 = vmatpush2.msra.mxu0 %v959
        %1028 = vmatprep.subr.mxu0 0.0
        %1029 = vmatpush2.msra.mxu0 %v958
        %1030 = vmatprep.subr.mxu0 0.0
        %1031 = vmatpush2.msra.mxu0 %v957
        %1032 = vmatprep.subr.mxu0 0.0
        %1033 = vmatpush2.msra.mxu0 %v956
        %1034 = vmatprep.subr.mxu0 0.0
        %1035 = vmatpush2.msra.mxu0 %v955
        %1036 = vmatprep.mubr.f32.mxu0 %v938
        %1037 = vmatmul.mubr.f32.gmra.mxu0 %v937
        %v1038 = vpop.f32.mrf.mxu0
        %v1039 = vadd.f32 %v971, %v1038
        %v1040 = vpop.f32.mrf.mxu0
        %1041 = vdwg.mxu0
        %1042 = vst [vmem:[%s378] sm:$0xff] %v1039
        %s1043 = sand.u32 %s187, 1
        %s1044 = scalar_lea.sflag [#allocation4], %s1043
        %s1045 = sand.u32 %s187, 1
        %s1046 = smul.addr %s1045, 8
        %s1047 = scalar_lea.vmem [#allocation14], %s1046
        // Predicated region
        $region77: #{tpu_custom_call.1} parent=47 // pred_check
          %p1048 = pneg %p197
        $region78: #{tpu_custom_call.1} parent=47 // pred_check_branch
          %1050 = sbr.rel (%p1048) target = $region80
        $region79: #{tpu_custom_call.1} parent=47 // pred_region
          %s1052 = ssub.s32 128, 128
          %1053 = vsyncadd %s1044, %s1052
          %s1054 = smul.addr %s27, 128
          %s1055 = scalar_lea.hbm %s7, %s1054
          %s1057 = sshll.u32 %s1047, 4
          %s1058 = int_to_ptr.vmem [resolvable:$true] %s1057
          %1060 = dma.vmem_to_hbm [thread:$0]  %s1058, 128, %s1055, %s1044
        $region80: #{tpu_custom_call.1} parent=47 // pred_fallthru
          _
      $region48: #{tpu_custom_call.1} parent=5 // pred_fallthru
        _
      %p1061 = scmp.le.s32.totalorder 2, %s22
      // Predicated region
      $region81: #{tpu_custom_call.1} parent=5 // pred_check
        %p1062 = pneg %p1061
      $region82: #{tpu_custom_call.1} parent=5 // pred_check_branch
        %1064 = sbr.rel (%p1062) target = $region84
      $region83: #{tpu_custom_call.1} parent=5 // pred_region
        %s1065 = ssub.s32 %s22, 2
        // Predicated region
        $region85: #{tpu_custom_call.1} parent=83 // pred_check
          %p1066 = pneg %p203
        $region86: #{tpu_custom_call.1} parent=83 // pred_check_branch
          %1068 = sbr.rel (%p1066) target = $region88
        $region87: #{tpu_custom_call.1} parent=83 // pred_region
          %s1069 = sand.u32 %s188, 1
          %s1070 = scalar_lea.sflag [#allocation4], %s1069
          %s1071 = sand.u32 %s188, 1
          %s1072 = smul.addr %s1071, 8
          %s1073 = scalar_lea.vmem [#allocation14], %s1072
          %1074 = dma.done %s1070, 128
        $region88: #{tpu_custom_call.1} parent=83 // pred_fallthru
          _
      $region84: #{tpu_custom_call.1} parent=5 // pred_fallthru
        _
    $region6: #{tpu_custom_call.1} parent=1 // loop_footer
      %s26 = sadd.s32 1, %s22
    $region7: #{tpu_custom_call.1} parent=1 // loop_footer_branch
      %21 = sbr.rel target = $region3
    $region8: #{tpu_custom_call.1} parent=1 // loop_exit
      _
    %1075 = vsyncpa [#allocation3], 1
    %s1076 = scalar_lea.sflag [#allocation3], 1
    %1077 = vsyncpa %s1076, 1
    %1078 = vsyncpa [#allocation6], 1
    %1079 = vsyncpa [#allocation9], 1
    %1080 = vsyncpa [#allocation12], 1
    %1081 = vsyncpa [#allocation4], 1
    %s1082 = scalar_lea.sflag [#allocation4], 1
    %1083 = vsyncpa %s1082, 1

</llo_original>
